<compile_context>
chip_gen: v5e
topology: v5e:2x2
jax: 0.10.0
libtpu: 0.0.40
codegen_flags: <defaults>
</compile_context>

<pallas_src>
import functools

import jax
import jax.numpy as jnp
from jax.experimental import pallas as pl
from jax.experimental.pallas import tpu as pltpu


def _round_up(x, m):
    return (x + m - 1) // m * m


# ---------------------------------------------------------------------------
# div_shift pre-pass: x -> bf16( where(scale changed, clip(round(x*ratio)), x) )
# ---------------------------------------------------------------------------
def _div_shift_kernel(scale_ref, x_ref, o_ref, *, lb, ub):
    """scale_ref (SMEM f32[2]): [ratio = scale_last / scale_this, apply_flag]."""
    ratio = scale_ref[0]
    apply_rescale = scale_ref[1] != 0.0

    @pl.when(apply_rescale)
    def _():
        o_ref[...] = jnp.clip(jnp.round(x_ref[...] * ratio), lb, ub).astype(o_ref.dtype)

    @pl.when(jnp.logical_not(apply_rescale))
    def _():
        o_ref[...] = x_ref[...].astype(o_ref.dtype)


def _pick_row_tile(rows, cols, budget_bytes=4 << 20):
    """Row tile keeping each f32 input block ~<= budget (sublane-aligned)."""
    tr = (budget_bytes // (4 * max(cols, 1))) // 8 * 8
    tr = max(8, tr)
    return rows if tr >= rows else tr


def _div_shift(x, ratio, apply_flag, lb, ub, out_dtype=jnp.bfloat16):
    B, R, C = x.shape
    tr = _pick_row_tile(R, C)
    grid = (B, pl.cdiv(R, tr))

    scales = jnp.stack([jnp.asarray(ratio, jnp.float32),
                        jnp.asarray(apply_flag).astype(jnp.float32)])

    kernel = functools.partial(_div_shift_kernel, lb=float(lb), ub=float(ub))
    return pl.pallas_call(
        kernel,
        out_shape=jax.ShapeDtypeStruct((B, R, C), out_dtype),
        grid=grid,
        in_specs=[
            pl.BlockSpec(memory_space=pltpu.MemorySpace.SMEM),
            pl.BlockSpec((pl.Squeezed(), tr, C), lambda b, r: (b, r, 0)),
        ],
        out_specs=pl.BlockSpec((pl.Squeezed(), tr, C), lambda b, r: (b, r, 0)),
        compiler_params=pltpu.CompilerParams(
            dimension_semantics=("parallel", "parallel"),
            vmem_limit_bytes=48 * 1024 * 1024),
    )(scales, x)


# ---------------------------------------------------------------------------
# Tiled batched matmul: bf16 operands -> f32 accumulator -> round/clip epilogue
# ---------------------------------------------------------------------------
def _matmul_infer_kernel(x1_ref, x2_ref, o_ref, acc_ref, *, inv_g, y_lb, y_ub):
    """x1_ref: (bb, tm, tk) bf16, x2_ref: (bb, tk, tn) bf16, o_ref: (bb, tm, tn) f32."""
    k = pl.program_id(3)

    @pl.when(k == 0)
    def _():
        acc_ref[...] = jnp.zeros_like(acc_ref)

    acc_ref[...] += jnp.einsum(
        'bmk,bkn->bmn', x1_ref[...], x2_ref[...],
        preferred_element_type=jnp.float32)

    @pl.when(k == pl.num_programs(3) - 1)
    def _():
        y = jnp.round(acc_ref[...] * inv_g)
        o_ref[...] = jnp.clip(y, y_lb, y_ub)


def _int_matmul_bf16(x1_bf, x2_bf, *, inv_g, y_lb, y_ub, bb, tm, tn, tk):
    Bp, Mp, Kp = x1_bf.shape
    _, _, Np = x2_bf.shape
    grid = (Bp // bb, Mp // tm, Np // tn, Kp // tk)

    kernel = functools.partial(_matmul_infer_kernel,
                               inv_g=float(inv_g),
                               y_lb=float(y_lb), y_ub=float(y_ub))

    return pl.pallas_call(
        kernel,
        out_shape=jax.ShapeDtypeStruct((Bp, Mp, Np), jnp.float32),
        grid=grid,
        in_specs=[
            pl.BlockSpec((bb, tm, tk), lambda b, i, j, k: (b, i, k)),
            pl.BlockSpec((bb, tk, tn), lambda b, i, j, k: (b, k, j)),
        ],
        out_specs=pl.BlockSpec((bb, tm, tn), lambda b, i, j, k: (b, i, j)),
        scratch_shapes=[pltpu.VMEM((bb, tm, tn), jnp.float32)],
        compiler_params=pltpu.CompilerParams(
            dimension_semantics=("parallel", "parallel", "parallel", "arbitrary"),
            vmem_limit_bytes=48 * 1024 * 1024),
    )(x1_bf, x2_bf)


def int_infer_matmul(x1, x2, *, ratio1, apply1, ratio2, apply2,
                     g_value, x1_bounds, x2_bounds, y_bounds,
                     tm=256, tn=256, tk=512, bb=None):
    """Full int-inference matmul: div_shift both operands, tiled matmul, /G, round, clip."""
    B, M, K = x1.shape
    B2, K2, N = x2.shape
    assert B == B2 and K == K2

    # Pre-pass: rescale each operand exactly once; emit bf16 operands.
    # TODO(synk): bf16 operands are exact only for integer magnitudes <= 256;
    # for >8-bit quantizers keep out_dtype=jnp.float32 here.
    x1_bf = _div_shift(x1.astype(jnp.float32), ratio1, apply1, *x1_bounds)
    x2_bf = _div_shift(x2.astype(jnp.float32), ratio2, apply2, *x2_bounds)

    # Pad to sublane/lane/MXU-friendly tile multiples (lane-dense output).
    Mp = _round_up(M, 8)
    Kp = _round_up(K, 128)
    Np = _round_up(N, 128)
    tm = min(tm, Mp)
    tn = min(tn, Np)
    tk = min(tk, Kp)
    Mp = _round_up(Mp, tm)
    Kp = _round_up(Kp, tk)
    Np = _round_up(Np, tn)

    if bb is None:
        # Many tiny matmuls: block several batch elements per grid step to
        # amortize the ~0.35us/step overhead; large matmuls: one batch/step.
        bb = min(B, 8) if (Mp <= 128 and Np <= 256 and Kp <= 512) else 1
    Bp = _round_up(B, bb)

    x1_bf = jnp.pad(x1_bf, ((0, Bp - B), (0, Mp - M), (0, Kp - K)))
    x2_bf = jnp.pad(x2_bf, ((0, Bp - B), (0, Kp - K), (0, Np - N)))

    y = _int_matmul_bf16(
        x1_bf, x2_bf,
        inv_g=1.0 / float(g_value),
        y_lb=float(y_bounds[0]), y_ub=float(y_bounds[1]),
        bb=bb, tm=tm, tn=tn, tk=tk)
    return y[:B, :M, :N]


# ---------------------------------------------------------------------------
# Module port
# ---------------------------------------------------------------------------
class OIntInferMatMul:
    """JAX/Pallas port of wptq_dev.nn_intinfer.MatMul.OIntInferMatMul."""

    def __init__(self, input1_shape, input2_shape, output_shape,
                 scale_x1, scale_x2, scale_y, g_value,
                 x1_bounds=(-127.0, 127.0),
                 x2_bounds=(-127.0, 127.0),
                 y_bounds=(-127.0, 127.0)):
        self.ops_name = 'MatMul'
        self.int_infer_flag = False
        self.input1_shape = tuple(input1_shape)
        self.input2_shape = tuple(input2_shape)
        self.output_shape = tuple(output_shape)
        self.scale_x1 = float(scale_x1)
        self.scale_x2 = float(scale_x2)
        self.scale_y = float(scale_y)
        self.G_value = float(g_value)
        self.x1_bit_lower_bound, self.x1_bit_upper_bound = x1_bounds
        self.x2_bit_lower_bound, self.x2_bit_upper_bound = x2_bounds
        self.y_bit_lower_bound, self.y_bit_upper_bound = y_bounds
        self.scale1_last_layer = None
        self.scale2_last_layer = None

    def __call__(self, a, b):
        if self.int_infer_flag:
            return self._forward_infer(a, b)
        return self._forward_scale(a, b)

    def _forward_scale(self, scale_x1_arr, scale_x2_arr):
        assert scale_x1_arr.shape == self.input1_shape
        assert scale_x2_arr.shape == self.input2_shape
        # torch.unique of a per-tensor-constant scale tensor -> single scalar.
        self.scale1_last_layer = jnp.unique(scale_x1_arr)[0]
        self.scale2_last_layer = jnp.unique(scale_x2_arr)[0]
        self.int_infer_flag = True
        return jnp.ones(self.output_shape, jnp.float32) * self.scale_y

    def _forward_infer(self, x1_int, x2_int):
        s1_last = jnp.asarray(self.scale1_last_layer, jnp.float32)
        s2_last = jnp.asarray(self.scale2_last_layer, jnp.float32)
        s1 = jnp.float32(self.scale_x1)
        s2 = jnp.float32(self.scale_x2)
        return int_infer_matmul(
            x1_int, x2_int,
            ratio1=s1_last / s1, apply1=(s1_last != s1),
            ratio2=s2_last / s2, apply2=(s2_last != s2),
            g_value=self.G_value,
            x1_bounds=(self.x1_bit_lower_bound, self.x1_bit_upper_bound),
            x2_bounds=(self.x2_bit_lower_bound, self.x2_bit_upper_bound),
            y_bounds=(self.y_bit_lower_bound, self.y_bit_upper_bound),
        )


# ---------------------------------------------------------------------------
# Reference + self-test
# ---------------------------------------------------------------------------
def _reference_infer(x1, x2, s1_last, s1, s2_last, s2, g, x1_b, x2_b, y_b):
    def div_shift(x, a, b, lo, hi):
        return jnp.where(a != b, jnp.clip(jnp.round(x * a / b), lo, hi), x)
    x1i = div_shift(x1, s1_last, s1, *x1_b)
    x2i = div_shift(x2, s2_last, s2, *x2_b)
    y = jnp.round(jnp.einsum('bmk,bkn->bmn', x1i, x2i) / g)
    return jnp.clip(y, *y_b)


if __name__ == "__main__":
    key = jax.random.PRNGKey(0)
    B, M, K, N = 2, 64, 256, 128
    input1_shape = (B, M, K)
    input2_shape = (B, K, N)
    output_shape = (B, M, N)

    mod = OIntInferMatMul(input1_shape, input2_shape, output_shape,
                          scale_x1=0.05, scale_x2=0.02, scale_y=0.1,
                          g_value=64.0)

    # Pass 1: scale propagation (previous layers emit per-tensor scale maps).
    s1_map = jnp.full(input1_shape, 0.04, jnp.float32)   # != scale_x1 -> rescale branch
    s2_map = jnp.full(input2_shape, 0.02, jnp.float32)   # == scale_x2 -> passthrough branch
    scale_next = mod(s1_map, s2_map)
    assert scale_next.shape == output_shape

    # Pass 2: integer inference (quantized values carried as float).
    k1, k2 = jax.random.split(key)
    x1_int = jnp.round(
        jax.random.uniform(k1, input1_shape, minval=-127.0, maxval=127.0)
    ).astype(jnp.float32)
    x2_int = jnp.round(
        jax.random.uniform(k2, input2_shape, minval=-127.0, maxval=127.0)
    ).astype(jnp.float32)

    y = mod(x1_int, x2_int)
    y = jax.block_until_ready(y)

    y_ref = _reference_infer(
        x1_int, x2_int,
        mod.scale1_last_layer, jnp.float32(mod.scale_x1),
        mod.scale2_last_layer, jnp.float32(mod.scale_x2),
        mod.G_value,
        (mod.x1_bit_lower_bound, mod.x1_bit_upper_bound),
        (mod.x2_bit_lower_bound, mod.x2_bit_upper_bound),
        (mod.y_bit_lower_bound, mod.y_bit_upper_bound),
    )
    assert y.shape == output_shape
    assert jnp.allclose(y, y_ref, atol=1e-4), "mismatch vs reference"

    print("KERNEL_OK")
</pallas_src>

<mosaic_0001>
module attributes {stable_mosaic.version = 11 : i64} {
  func.func @_div_shift_kernel(%arg0: i32, %arg1: i32, %arg2: memref<2xf32, #tpu.memory_space<smem>>, %arg3: memref<1x64x256xf32, #tpu.memory_space<vmem>>, %arg4: memref<1x64x256xbf16, #tpu.memory_space<vmem>>) attributes {dimension_semantics = [#tpu.dimension_semantics<parallel>, #tpu.dimension_semantics<parallel>], iteration_bounds = array<i64: 2, 1>, scalar_prefetch = 0 : i64, scratch_operands = 0 : i64, tpu.core_type = #tpu.core_type<tc>, window_params = [{transform_indices = @transform_0, window_bounds = array<i64: 2>}, {transform_indices = @transform_1, window_bounds = array<i64: 1, 64, 256>}, {transform_indices = @transform_2, window_bounds = array<i64: 1, 64, 256>}]} {
    %c0 = arith.constant 0 : index
    %0 = memref.load %arg2[%c0] : memref<2xf32, #tpu.memory_space<smem>>
    %c1 = arith.constant 1 : index
    %1 = memref.load %arg2[%c1] : memref<2xf32, #tpu.memory_space<smem>>
    %cst = arith.constant 0.000000e+00 : f32
    %2 = arith.cmpf one, %1, %cst : f32
    %3 = arith.extui %2 : i1 to i32
    %c0_i32 = arith.constant 0 : i32
    %4 = arith.cmpi ne, %3, %c0_i32 : i32
    scf.if %4 {
      %c0_1 = arith.constant 0 : index
      %c0_2 = arith.constant 0 : index
      %c0_3 = arith.constant 0 : index
      %8 = vector.load %arg3[%c0_1, %c0_2, %c0_3] : memref<1x64x256xf32, #tpu.memory_space<vmem>>, vector<1x64x256xf32>
      %9 = vector.shape_cast %8 : vector<1x64x256xf32> to vector<64x256xf32>
      %10 = vector.broadcast %0 : f32 to vector<64x256xf32>
      %11 = arith.mulf %9, %10 : vector<64x256xf32>
      %12 = math.roundeven %11 : vector<64x256xf32>
      %cst_4 = arith.constant -1.270000e+02 : f32
      %cst_5 = arith.constant 1.270000e+02 : f32
      %13 = vector.broadcast %cst_4 : f32 to vector<64x256xf32>
      %14 = arith.maximumf %13, %12 : vector<64x256xf32>
      %15 = vector.broadcast %cst_5 : f32 to vector<64x256xf32>
      %16 = arith.minimumf %15, %14 : vector<64x256xf32>
      %17 = arith.truncf %16 : vector<64x256xf32> to vector<64x256xbf16>
      %c0_6 = arith.constant 0 : index
      %c0_7 = arith.constant 0 : index
      %c0_8 = arith.constant 0 : index
      %18 = vector.load %arg4[%c0_6, %c0_7, %c0_8] : memref<1x64x256xbf16, #tpu.memory_space<vmem>>, vector<1x64x256xbf16>
      %19 = vector.shape_cast %18 : vector<1x64x256xbf16> to vector<64x256xbf16>
      %20 = vector.shape_cast %17 : vector<64x256xbf16> to vector<1x64x256xbf16>
      tpu.vector_store %arg4[%c0_6, %c0_7, %c0_8], %20 {strides = array<i32>} : memref<1x64x256xbf16, #tpu.memory_space<vmem>>, vector<1x64x256xbf16>,
    } else {
    }
    %true = arith.constant true
    %5 = arith.xori %2, %true : i1
    %6 = arith.extui %5 : i1 to i32
    %c0_i32_0 = arith.constant 0 : i32
    %7 = arith.cmpi ne, %6, %c0_i32_0 : i32
    scf.if %7 {
      %c0_1 = arith.constant 0 : index
      %c0_2 = arith.constant 0 : index
      %c0_3 = arith.constant 0 : index
      %8 = vector.load %arg3[%c0_1, %c0_2, %c0_3] : memref<1x64x256xf32, #tpu.memory_space<vmem>>, vector<1x64x256xf32>
      %9 = vector.shape_cast %8 : vector<1x64x256xf32> to vector<64x256xf32>
      %10 = arith.truncf %9 : vector<64x256xf32> to vector<64x256xbf16>
      %c0_4 = arith.constant 0 : index
      %c0_5 = arith.constant 0 : index
      %c0_6 = arith.constant 0 : index
      %11 = vector.load %arg4[%c0_4, %c0_5, %c0_6] : memref<1x64x256xbf16, #tpu.memory_space<vmem>>, vector<1x64x256xbf16>
      %12 = vector.shape_cast %11 : vector<1x64x256xbf16> to vector<64x256xbf16>
      %13 = vector.shape_cast %10 : vector<64x256xbf16> to vector<1x64x256xbf16>
      tpu.vector_store %arg4[%c0_4, %c0_5, %c0_6], %13 {strides = array<i32>} : memref<1x64x256xbf16, #tpu.memory_space<vmem>>, vector<1x64x256xbf16>,
    } else {
    }
    return
  }
  func.func @transform_0(%arg0: i32, %arg1: i32) -> i32 {
    %c0_i32 = arith.constant 0 : i32
    %c0_i32_0 = arith.constant 0 : i32
    return %c0_i32 : i32
  }
  func.func @transform_1(%arg0: i32, %arg1: i32) -> (i32, i32, i32) {
    %c0_i32 = arith.constant 0 : i32
    %c0_i32_0 = arith.constant 0 : i32
    return %arg0, %arg1, %c0_i32 : i32, i32, i32
  }
  func.func @transform_2(%arg0: i32, %arg1: i32) -> (i32, i32, i32) {
    %c0_i32 = arith.constant 0 : i32
    %c0_i32_0 = arith.constant 0 : i32
    return %arg0, %arg1, %c0_i32 : i32, i32, i32
  }
}

</mosaic_0001>

<llo_original>
// kernel: tpu_custom_call.1
$region0: #{tpu_custom_call.1}
  #allocation0 [shape = 'u32[]', space=smem, size = 0x4, offset = 0x4, fixed_abs, tag = 'smem constant byte address 0x4 - core index']
  #allocation1 [shape = 'u32[72,128]{1,0:T(1,128)}', space=vmem, size = 0x9000, scoped, tag = 'internal scratch']
  %s0 = inlined_call_operand.hbm [shape: f32[2], index: 0, kind: input, shape index: {}]
  %s1 = inlined_call_operand.hbm [shape: f32[2,64,256], index: 1, kind: input, shape index: {}]
  %s2 = inlined_call_operand.hbm [shape: bf16[2,64,256], index: 2, kind: output, shape index: {}]
  %s3 = sld [smem:[#allocation0]]
  $region57: #{tpu_custom_call.1} parent=0
    _
  %s5 = ssub.s32 1, %s3
  %s6 = scalar_select 0, %s5, %s3
  $region1: #{tpu_custom_call.1} parent=0
    #allocation2 [shape = 'u8[512]{0}', space=smem, size = 0x200, scoped, tag = 'input window, operand 0, single buffered']
    #allocation3 [shape = 's32[2]{0}', space=sflag, size = 0x8, scoped, tag = 'scoped memory for tpu_custom_call.1']
    #allocation4 [shape = 's32[2]{0}', space=sflag, size = 0x8, scoped, tag = 'scoped memory for tpu_custom_call.1']
    #allocation5 [shape = 's32[2]{0}', space=sflag, size = 0x8, scoped, tag = 'scoped memory for tpu_custom_call.1']
    #allocation6 [shape = 'u8[131072]{0}', space=vmem, size = 0x20000, scoped, tag = 'input window, operand 1']
    #allocation7 [shape = 'u8[65536]{0}', space=vmem, size = 0x10000, scoped, tag = 'output window, operand 0']
    %7 = vsyncpa [#allocation5], 0
    %8 = vsyncpa [#allocation3], 0
    %s9 = scalar_lea.sflag [#allocation3], 1
    %10 = vsyncpa %s9, 0
    %11 = vsyncpa [#allocation4], 0
    %s12 = scalar_lea.sflag [#allocation4], 1
    %13 = vsyncpa %s12, 0
    loop: start=0, step=1, limit=4
    $region2: #{tpu_custom_call.1} parent=1 // loop_pre_header
      _
    $region3: #{tpu_custom_call.1} parent=1 // loop_header
      %s15 = sphi 0, %s19
      %p16 = scmp.ge.s32.totalorder %s15, 4
      %s22 = sphi 0, %s34
      %s23 = sphi 0, %s30
      %s24 = sphi 0, %s22
      %s25 = sphi 0, %s23
      %s26 = sphi 0, %s24
      %s27 = sphi 0, %s25
      %s35 = sphi 0, %s35
      %s37 = sphi 0, %s35
      %s38 = sphi 0, %s37
      %s52 = sphi 0, %s38
      %s60 = sphi 0, %s62
      %s63 = sphi 0, %s60
      %s64 = sphi 0, %s63
      %s80 = sphi 0, %s64
      %s88 = sphi 0, %s90
      %s91 = sphi 0, %s88
      %s92 = sphi 0, %s91
      %s108 = sphi 0, %s92
    $region4: #{tpu_custom_call.1} parent=1 // loop_header_branch
      %18 = sbr.rel (%p16) target = $region8
    $region5: #{tpu_custom_call.1} parent=1 // loop_body
      %s20 = ssub.s32 %s15, 1
      %s21 = ssub.s32 %s15, 2
      %s28 = sadd.s32 1, %s23
      %p29 = scmp.ge.s32.totalorder %s28, 1
      %s30 = scalar_select %p29, 0, %s28
      %s31 = sadd.s32 1, %s22
      %s32 = scalar_select %p29, %s31, %s22
      %p33 = scmp.ge.s32.totalorder %s32, 2
      %s34 = scalar_select %p33, 0, %s32
      %s36 = sadd.s32 %s35, 1
      %p39 = scmp.eq.s32.totalorder %s15, 1
      %p40 = scmp.ne.s32.totalorder %s35, %s37
      %p41 = scmp.eq.s32.totalorder %s15, 0
      %p42 = por %p40, %p41
      %p43 = scmp.ne.s32.totalorder %s35, %s37
      %p44 = scmp.eq.s32.totalorder %s20, 1
      %p45 = por %p43, %p44
      %p46 = scmp.ne.s32.totalorder %s37, %s38
      %p47 = scmp.eq.s32.totalorder %s20, 0
      %p48 = por %p46, %p47
      %p49 = scmp.ne.s32.totalorder %s37, %s38
      %p50 = scmp.eq.s32.totalorder %s21, 1
      %p51 = por %p49, %p50
      %p53 = scmp.ne.s32.totalorder %s38, %s52
      %p54 = scmp.eq.s32.totalorder %s21, 0
      %p55 = por %p53, %p54
      %s56 = ssub.s32 %s22, %s34
      %s57 = ssub.s32 %s23, %s30
      %s58 = sor.u32 %s56, %s57
      %p59 = scmp.eq.s32.totalorder %s58, 0
      %s61 = sadd.s32 %s60, 1
      %s62 = scalar_select %p59, %s60, %s61
      %p65 = pneg %p59
      %p66 = scmp.eq.s32.totalorder %s15, 1
      %p67 = por %p65, %p66
      %p68 = scmp.ne.s32.totalorder %s60, %s63
      %p69 = scmp.eq.s32.totalorder %s15, 0
      %p70 = por %p68, %p69
      %p71 = scmp.ne.s32.totalorder %s60, %s63
      %p72 = scmp.eq.s32.totalorder %s20, 1
      %p73 = por %p71, %p72
      %p74 = scmp.ne.s32.totalorder %s63, %s64
      %p75 = scmp.eq.s32.totalorder %s20, 0
      %p76 = por %p74, %p75
      %p77 = scmp.ne.s32.totalorder %s63, %s64
      %p78 = scmp.eq.s32.totalorder %s21, 1
      %p79 = por %p77, %p78
      %p81 = scmp.ne.s32.totalorder %s64, %s80
      %p82 = scmp.eq.s32.totalorder %s21, 0
      %p83 = por %p81, %p82
      %s84 = ssub.s32 %s22, %s34
      %s85 = ssub.s32 %s23, %s30
      %s86 = sor.u32 %s84, %s85
      %p87 = scmp.eq.s32.totalorder %s86, 0
      %s89 = sadd.s32 %s88, 1
      %s90 = scalar_select %p87, %s88, %s89
      %p93 = pneg %p87
      %p94 = scmp.eq.s32.totalorder %s15, 1
      %p95 = por %p93, %p94
      %p96 = scmp.ne.s32.totalorder %s88, %s91
      %p97 = scmp.eq.s32.totalorder %s15, 0
      %p98 = por %p96, %p97
      %p99 = scmp.ne.s32.totalorder %s88, %s91
      %p100 = scmp.eq.s32.totalorder %s20, 1
      %p101 = por %p99, %p100
      %p102 = scmp.ne.s32.totalorder %s91, %s92
      %p103 = scmp.eq.s32.totalorder %s20, 0
      %p104 = por %p102, %p103
      %p105 = scmp.ne.s32.totalorder %s91, %s92
      %p106 = scmp.eq.s32.totalorder %s21, 1
      %p107 = por %p105, %p106
      %p109 = scmp.ne.s32.totalorder %s92, %s108
      %p110 = scmp.eq.s32.totalorder %s21, 0
      %p111 = por %p109, %p110
      %p112 = scmp.le.s32.totalorder 1, %s15
      %p113 = scmp.lt.s32.totalorder %s15, 3
      %p114 = pnand %p112, %p113
      %p115 = pneg %p114
      // Predicated region
      $region9: #{tpu_custom_call.1} parent=5 // pred_check
        _
      $region10: #{tpu_custom_call.1} parent=5 // pred_check_branch
        %117 = sbr.rel (%p114) target = $region12
      $region11: #{tpu_custom_call.1} parent=5 // pred_region
        %s118 = ssub.s32 %s15, 1
        // Predicated region
        $region13: #{tpu_custom_call.1} parent=11 // pred_check
          %p119 = pneg %p48
        $region14: #{tpu_custom_call.1} parent=11 // pred_check_branch
          %121 = sbr.rel (%p119) target = $region16
        $region15: #{tpu_custom_call.1} parent=11 // pred_region
          %123 = vsyncadd [#allocation5], 0
          %s125 = sshll.u32 %s0, 4
          %s126 = int_to_ptr.hbm [resolvable:$true] %s125
          %128 = dma.hbm_to_smem %s126, 16, [#allocation2], [#allocation5]
        $region16: #{tpu_custom_call.1} parent=11 // pred_fallthru
          _
      $region12: #{tpu_custom_call.1} parent=5 // pred_fallthru
        _
      %p129 = scmp.lt.s32.totalorder %s15, 2
      // Predicated region
      $region17: #{tpu_custom_call.1} parent=5 // pred_check
        %p130 = pneg %p129
      $region18: #{tpu_custom_call.1} parent=5 // pred_check_branch
        %132 = sbr.rel (%p130) target = $region20
      $region19: #{tpu_custom_call.1} parent=5 // pred_region
        // Predicated region
        $region21: #{tpu_custom_call.1} parent=19 // pred_check
          %p133 = pneg %p70
        $region22: #{tpu_custom_call.1} parent=19 // pred_check_branch
          %135 = sbr.rel (%p133) target = $region24
        $region23: #{tpu_custom_call.1} parent=19 // pred_region
          %s136 = sand.u32 %s60, 1
          %s137 = scalar_lea.sflag [#allocation3], %s136
          %s138 = sand.u32 %s60, 1
          %s139 = smul.addr %s138, 128
          %s140 = scalar_lea.vmem [#allocation6], %s139
          %s141 = smul.u32 8, %s23
          %143 = vsyncadd %s137, 0
          %s144 = smul.addr %s141, 2
          %s145 = smul.addr %s22, 16
          %s146 = sadd.s32 %s144, %s145
          %s147 = smul.addr %s146, 8
          %s148 = scalar_lea.hbm %s1, %s147
          %s149 = sshll.u32 %s148, 4
          %s150 = int_to_ptr.hbm [resolvable:$true] %s149
          %s151 = sshll.u32 %s140, 4
          %s152 = int_to_ptr.vmem [resolvable:$true] %s151
          %157 = dma.hbm_to_vmem [thread:$0]  %s150, 2048, %s152, %s137, 256, 256, 16
        $region24: #{tpu_custom_call.1} parent=19 // pred_fallthru
          _
      $region20: #{tpu_custom_call.1} parent=5 // pred_fallthru
        _
      %p158 = scmp.le.s32.totalorder 1, %s15
      %p159 = scmp.lt.s32.totalorder %s15, 3
      %p160 = pnand %p158, %p159
      %p161 = pneg %p160
      // Predicated region
      $region25: #{tpu_custom_call.1} parent=5 // pred_check
        _
      $region26: #{tpu_custom_call.1} parent=5 // pred_check_branch
        %163 = sbr.rel (%p160) target = $region28
      $region27: #{tpu_custom_call.1} parent=5 // pred_region
        %s164 = ssub.s32 %s15, 1
        // Predicated region
        $region29: #{tpu_custom_call.1} parent=27 // pred_check
          %p165 = pneg %p48
        $region30: #{tpu_custom_call.1} parent=27 // pred_check_branch
          %167 = sbr.rel (%p165) target = $region32
        $region31: #{tpu_custom_call.1} parent=27 // pred_region
          %169 = dma.done [#allocation5], 16
        $region32: #{tpu_custom_call.1} parent=27 // pred_fallthru
          _
        %s170 = sand.u32 %s63, 1
        %s171 = scalar_lea.sflag [#allocation3], %s170
        %s172 = sand.u32 %s63, 1
        %s173 = smul.addr %s172, 128
        %s174 = scalar_lea.vmem [#allocation6], %s173
        // Predicated region
        $region33: #{tpu_custom_call.1} parent=27 // pred_check
          %p175 = pneg %p76
        $region34: #{tpu_custom_call.1} parent=27 // pred_check_branch
          %177 = sbr.rel (%p175) target = $region36
        $region35: #{tpu_custom_call.1} parent=27 // pred_region
          %179 = dma.done %s171, 2048
        $region36: #{tpu_custom_call.1} parent=27 // pred_fallthru
          _
        %180 = sfence
        %p181 = pneg %p48
        %p182 = pneg %p45
        %s183 = sand.u32 %s63, 1
        %s184 = scalar_lea.sflag [#allocation3], %s183
        %s185 = sand.u32 %s63, 1
        %s186 = smul.addr %s185, 128
        %s187 = scalar_lea.vmem [#allocation6], %s186
        %p188 = pneg %p76
        %p189 = pneg %p73
        %p190 = pneg %p104
        %p191 = pneg %p101
        %s192 = sand.u32 %s91, 1
        %s193 = scalar_lea.sflag [#allocation4], %s192
        %s194 = sand.u32 %s91, 1
        %s195 = smul.addr %s194, 64
        %s196 = scalar_lea.vmem [#allocation7], %s195
        %s197 = smul.u32 8, %s25
        %s198 = smul.u32 8, %s25
        %s199 = sld [smem:[#allocation2]]
        %s200 = sld [smem:[#allocation2 + $0x1]]
        %p201 = scmp.ne.f32.partialorder %s200, 0.0
        // Predicated region
        $region37: #{tpu_custom_call.1} parent=27 // pred_check
          %p202 = pneg %p201
        $region38: #{tpu_custom_call.1} parent=27 // pred_check_branch
          %204 = sbr.rel (%p202) target = $region40
        $region39: #{tpu_custom_call.1} parent=27 // pred_region
          %v205 = vld [vmem:[%s174] sm:$0xff]
          %v206 = vld [vmem:[%s174 + $0x8] sm:$0xff]
          %v207 = vld [vmem:[%s174 + $0x10] sm:$0xff]
          %v208 = vld [vmem:[%s174 + $0x18] sm:$0xff]
          %v209 = vld [vmem:[%s174 + $0x20] sm:$0xff]
          %v210 = vld [vmem:[%s174 + $0x28] sm:$0xff]
          %v211 = vld [vmem:[%s174 + $0x30] sm:$0xff]
          %v212 = vld [vmem:[%s174 + $0x38] sm:$0xff]
          %v213 = vld [vmem:[%s174 + $0x40] sm:$0xff]
          %v214 = vld [vmem:[%s174 + $0x48] sm:$0xff]
          %v215 = vld [vmem:[%s174 + $0x50] sm:$0xff]
          %v216 = vld [vmem:[%s174 + $0x58] sm:$0xff]
          %v217 = vld [vmem:[%s174 + $0x60] sm:$0xff]
          %v218 = vld [vmem:[%s174 + $0x68] sm:$0xff]
          %v219 = vld [vmem:[%s174 + $0x70] sm:$0xff]
          %v220 = vld [vmem:[%s174 + $0x78] sm:$0xff]
          %v221 = vstv %s199
          %v222 = vmul.f32 %v205, %v221
          %v223 = vmul.f32 %v206, %v221
          %v224 = vmul.f32 %v207, %v221
          %v225 = vmul.f32 %v208, %v221
          %v226 = vmul.f32 %v209, %v221
          %v227 = vmul.f32 %v210, %v221
          %v228 = vmul.f32 %v211, %v221
          %v229 = vmul.f32 %v212, %v221
          %v230 = vmul.f32 %v213, %v221
          %v231 = vmul.f32 %v214, %v221
          %v232 = vmul.f32 %v215, %v221
          %v233 = vmul.f32 %v216, %v221
          %v234 = vmul.f32 %v217, %v221
          %v235 = vmul.f32 %v218, %v221
          %v236 = vmul.f32 %v219, %v221
          %v237 = vmul.f32 %v220, %v221
          %v238 = vround.ne.pseudo %v222
          %v239 = vround.ne.pseudo %v223
          %v240 = vround.ne.pseudo %v224
          %v241 = vround.ne.pseudo %v225
          %v242 = vround.ne.pseudo %v226
          %v243 = vround.ne.pseudo %v227
          %v244 = vround.ne.pseudo %v228
          %v245 = vround.ne.pseudo %v229
          %v246 = vround.ne.pseudo %v230
          %v247 = vround.ne.pseudo %v231
          %v248 = vround.ne.pseudo %v232
          %v249 = vround.ne.pseudo %v233
          %v250 = vround.ne.pseudo %v234
          %v251 = vround.ne.pseudo %v235
          %v252 = vround.ne.pseudo %v236
          %v253 = vround.ne.pseudo %v237
          %v254 = vmax.f32 %v238, -127.0
          %v255 = vmax.f32 %v239, -127.0
          %v256 = vmax.f32 %v240, -127.0
          %v257 = vmax.f32 %v241, -127.0
          %v258 = vmax.f32 %v242, -127.0
          %v259 = vmax.f32 %v243, -127.0
          %v260 = vmax.f32 %v244, -127.0
          %v261 = vmax.f32 %v245, -127.0
          %v262 = vmax.f32 %v246, -127.0
          %v263 = vmax.f32 %v247, -127.0
          %v264 = vmax.f32 %v248, -127.0
          %v265 = vmax.f32 %v249, -127.0
          %v266 = vmax.f32 %v250, -127.0
          %v267 = vmax.f32 %v251, -127.0
          %v268 = vmax.f32 %v252, -127.0
          %v269 = vmax.f32 %v253, -127.0
          %v270 = vmin.f32 %v254, 127.0
          %v271 = vmin.f32 %v255, 127.0
          %v272 = vmin.f32 %v256, 127.0
          %v273 = vmin.f32 %v257, 127.0
          %v274 = vmin.f32 %v258, 127.0
          %v275 = vmin.f32 %v259, 127.0
          %v276 = vmin.f32 %v260, 127.0
          %v277 = vmin.f32 %v261, 127.0
          %v278 = vmin.f32 %v262, 127.0
          %v279 = vmin.f32 %v263, 127.0
          %v280 = vmin.f32 %v264, 127.0
          %v281 = vmin.f32 %v265, 127.0
          %v282 = vmin.f32 %v266, 127.0
          %v283 = vmin.f32 %v267, 127.0
          %v284 = vmin.f32 %v268, 127.0
          %v285 = vmin.f32 %v269, 127.0
          %v286 = vpack.c.bf16 %v271, %v270
          %v287 = vpack.c.bf16 %v273, %v272
          %v288 = vpack.c.bf16 %v275, %v274
          %v289 = vpack.c.bf16 %v277, %v276
          %v290 = vpack.c.bf16 %v279, %v278
          %v291 = vpack.c.bf16 %v281, %v280
          %v292 = vpack.c.bf16 %v283, %v282
          %v293 = vpack.c.bf16 %v285, %v284
          %294 = vst [vmem:[%s196] sm:$0xff] %v286
          %295 = vst [vmem:[%s196 + $0x8] sm:$0xff] %v287
          %296 = vst [vmem:[%s196 + $0x10] sm:$0xff] %v288
          %297 = vst [vmem:[%s196 + $0x18] sm:$0xff] %v289
          %298 = vst [vmem:[%s196 + $0x20] sm:$0xff] %v290
          %299 = vst [vmem:[%s196 + $0x28] sm:$0xff] %v291
          %300 = vst [vmem:[%s196 + $0x30] sm:$0xff] %v292
          %301 = vst [vmem:[%s196 + $0x38] sm:$0xff] %v293
        $region40: #{tpu_custom_call.1} parent=27 // pred_fallthru
          _
        %p302 = pneg %p201
        // Predicated region
        $region41: #{tpu_custom_call.1} parent=27 // pred_check
          _
        $region42: #{tpu_custom_call.1} parent=27 // pred_check_branch
          %304 = sbr.rel (%p201) target = $region44
        $region43: #{tpu_custom_call.1} parent=27 // pred_region
          %v305 = vld [vmem:[%s174] sm:$0xff]
          %v306 = vld [vmem:[%s174 + $0x8] sm:$0xff]
          %v307 = vld [vmem:[%s174 + $0x10] sm:$0xff]
          %v308 = vld [vmem:[%s174 + $0x18] sm:$0xff]
          %v309 = vld [vmem:[%s174 + $0x20] sm:$0xff]
          %v310 = vld [vmem:[%s174 + $0x28] sm:$0xff]
          %v311 = vld [vmem:[%s174 + $0x30] sm:$0xff]
          %v312 = vld [vmem:[%s174 + $0x38] sm:$0xff]
          %v313 = vld [vmem:[%s174 + $0x40] sm:$0xff]
          %v314 = vld [vmem:[%s174 + $0x48] sm:$0xff]
          %v315 = vld [vmem:[%s174 + $0x50] sm:$0xff]
          %v316 = vld [vmem:[%s174 + $0x58] sm:$0xff]
          %v317 = vld [vmem:[%s174 + $0x60] sm:$0xff]
          %v318 = vld [vmem:[%s174 + $0x68] sm:$0xff]
          %v319 = vld [vmem:[%s174 + $0x70] sm:$0xff]
          %v320 = vld [vmem:[%s174 + $0x78] sm:$0xff]
          %v321 = vpack.c.bf16 %v306, %v305
          %v322 = vpack.c.bf16 %v308, %v307
          %v323 = vpack.c.bf16 %v310, %v309
          %v324 = vpack.c.bf16 %v312, %v311
          %v325 = vpack.c.bf16 %v314, %v313
          %v326 = vpack.c.bf16 %v316, %v315
          %v327 = vpack.c.bf16 %v318, %v317
          %v328 = vpack.c.bf16 %v320, %v319
          %329 = vst [vmem:[%s196] sm:$0xff] %v321
          %330 = vst [vmem:[%s196 + $0x8] sm:$0xff] %v322
          %331 = vst [vmem:[%s196 + $0x10] sm:$0xff] %v323
          %332 = vst [vmem:[%s196 + $0x18] sm:$0xff] %v324
          %333 = vst [vmem:[%s196 + $0x20] sm:$0xff] %v325
          %334 = vst [vmem:[%s196 + $0x28] sm:$0xff] %v326
          %335 = vst [vmem:[%s196 + $0x30] sm:$0xff] %v327
          %336 = vst [vmem:[%s196 + $0x38] sm:$0xff] %v328
        $region44: #{tpu_custom_call.1} parent=27 // pred_fallthru
          _
        %s337 = sand.u32 %s91, 1
        %s338 = scalar_lea.sflag [#allocation4], %s337
        %s339 = sand.u32 %s91, 1
        %s340 = smul.addr %s339, 64
        %s341 = scalar_lea.vmem [#allocation7], %s340
        // Predicated region
        $region45: #{tpu_custom_call.1} parent=27 // pred_check
          %p342 = pneg %p101
        $region46: #{tpu_custom_call.1} parent=27 // pred_check_branch
          %344 = sbr.rel (%p342) target = $region48
        $region47: #{tpu_custom_call.1} parent=27 // pred_region
          %s345 = smul.u32 8, %s25
          %347 = vsyncadd %s338, 0
          %s348 = smul.addr %s345, 2
          %s349 = smul.addr %s24, 16
          %s350 = sadd.s32 %s348, %s349
          %s351 = smul.addr %s350, 4
          %s352 = scalar_lea.hbm %s2, %s351
          %s353 = sshll.u32 %s341, 4
          %s354 = int_to_ptr.vmem [resolvable:$true] %s353
          %s355 = sshll.u32 %s352, 4
          %s356 = int_to_ptr.hbm [resolvable:$true] %s355
          %361 = dma.vmem_to_hbm [thread:$0]  %s354, 1024, %s356, %s338, 128, 128, 8
        $region48: #{tpu_custom_call.1} parent=27 // pred_fallthru
          _
      $region28: #{tpu_custom_call.1} parent=5 // pred_fallthru
        _
      %p362 = scmp.le.s32.totalorder 2, %s15
      // Predicated region
      $region49: #{tpu_custom_call.1} parent=5 // pred_check
        %p363 = pneg %p362
      $region50: #{tpu_custom_call.1} parent=5 // pred_check_branch
        %365 = sbr.rel (%p363) target = $region52
      $region51: #{tpu_custom_call.1} parent=5 // pred_region
        %s366 = ssub.s32 %s15, 2
        // Predicated region
        $region53: #{tpu_custom_call.1} parent=51 // pred_check
          %p367 = pneg %p107
        $region54: #{tpu_custom_call.1} parent=51 // pred_check_branch
          %369 = sbr.rel (%p367) target = $region56
        $region55: #{tpu_custom_call.1} parent=51 // pred_region
          %s370 = sand.u32 %s92, 1
          %s371 = scalar_lea.sflag [#allocation4], %s370
          %s372 = sand.u32 %s92, 1
          %s373 = smul.addr %s372, 64
          %s374 = scalar_lea.vmem [#allocation7], %s373
          %376 = dma.done %s371, 1024
        $region56: #{tpu_custom_call.1} parent=51 // pred_fallthru
          _
      $region52: #{tpu_custom_call.1} parent=5 // pred_fallthru
        _
    $region6: #{tpu_custom_call.1} parent=1 // loop_footer
      %s19 = sadd.s32 1, %s15
    $region7: #{tpu_custom_call.1} parent=1 // loop_footer_branch
      %14 = sbr.rel target = $region3
    $region8: #{tpu_custom_call.1} parent=1 // loop_exit
      _
    %377 = vsyncpa [#allocation3], 1
    %s378 = scalar_lea.sflag [#allocation3], 1
    %379 = vsyncpa %s378, 1
    %380 = vsyncpa [#allocation4], 1
    %s381 = scalar_lea.sflag [#allocation4], 1
    %382 = vsyncpa %s381, 1
    %383 = vsyncpa [#allocation5], 1
    %s384 = scalar_lea.sflag [#allocation5], 1
    %385 = vsyncpa %s384, 1

</llo_original>
